<compile_context>
chip_gen: v5e
topology: v5e:2x2
jax: 0.10.0
libtpu: 0.0.40
codegen_flags: <defaults>
</compile_context>

<pallas_src>
import functools

import jax
import jax.numpy as jnp
from jax.experimental import pallas as pl
from jax.experimental.pallas import tpu as pltpu


def _router_kernel(x_ref, wgt_ref, vals_ref, inds_ref, gates_ref, *, top_k):
    # x_ref:     (TILE_N, d)       activations, native dtype (f32 / bf16)
    # wgt_ref:   (d, E)            gate weight (pre-transposed), VMEM-resident
    # vals_ref:  (TILE_N, top_k)
    # inds_ref:  (TILE_N, top_k)   int32
    # gates_ref: (TILE_N, E)
    x = x_ref[...]
    wg_t = wgt_ref[...]

    # Canonical [TILE_N, d] @ [d, E] matmul: the tiny weight is MXU-stationary,
    # the streamed x tile is the LHS. f32 accumulation on the MXU.
    logits = jnp.dot(x, wg_t, preferred_element_type=jnp.float32)   # (TILE_N, E)

    # Dense softmax over experts (last axis) -- matches the PyTorch module.
    m = jnp.max(logits, axis=-1, keepdims=True)                     # (TILE_N, 1)
    e = jnp.exp(logits - m)                                         # (TILE_N, E)
    denom = jnp.sum(e, axis=-1, keepdims=True)                      # (TILE_N, 1)
    gates = e * pl.reciprocal(denom, approx=True)                   # (TILE_N, E) f32
    gates_ref[...] = gates.astype(gates_ref.dtype)

    # Iterative top-k over the expert axis. top_k is a tiny static constant ->
    # keep it a Python unroll; buffer columns and store each output once.
    n_e = gates.shape[-1]
    expert_ids = jax.lax.broadcasted_iota(jnp.int32, gates.shape, dimension=1)
    work = gates
    val_cols = []
    idx_cols = []
    for _ in range(top_k):
        v = jnp.max(work, axis=-1, keepdims=True)                   # (TILE_N, 1)
        is_max = work == v
        # first-occurrence (lowest expert id) on ties -> matches lax.top_k
        idx = jnp.min(jnp.where(is_max, expert_ids, n_e),
                      axis=-1, keepdims=True)                       # (TILE_N, 1) i32
        val_cols.append(v)
        idx_cols.append(idx)
        work = jnp.where(expert_ids == idx, -jnp.inf, work)

    vals_ref[...] = jnp.concatenate(val_cols, axis=-1).astype(vals_ref.dtype)
    inds_ref[...] = jnp.concatenate(idx_cols, axis=-1)


def _round_down(x, m):
    return max(m, (x // m) * m) if x >= m else x


def noisy_topk_router_forward(hidden_states, gate_w, top_k, *, tile_n=2048):
    """Eval-mode forward of NoisyTopkRouter.

    hidden_states: (B, T, d)
    gate_w:        (n_exp, d)   -- PyTorch nn.Linear weight layout
    returns (vals (B,T,top_k), inds (B,T,top_k) int32, gates (B,T,n_exp))
    """
    B, T, d = hidden_states.shape
    n_exp = gate_w.shape[0]
    N = B * T

    x2d = hidden_states.reshape(N, d)
    # Cast once (tiny) so the MXU sees a homogeneous dtype matmul; pre-transpose
    # so the weight is the stationary RHS of a canonical [N, d] x [d, E] matmul.
    wg_t = gate_w.astype(hidden_states.dtype).T                     # (d, n_exp)

    itemsize = jnp.dtype(hidden_states.dtype).itemsize

    # ---- VMEM budget, derived from the actual chip (v7x: 64 MiB/TC). ----
    try:
        info = pltpu.get_tpu_info()
        vmem_cap = getattr(info, "vmem_capacity_bytes", None) or (64 << 20)
    except Exception:  # pragma: no cover - conservative fallback
        vmem_cap = 64 << 20
    vmem_limit = max(16 << 20, min(100 << 20, (vmem_cap * 3) // 4))
    budget = max(8 << 20, vmem_limit - (8 << 20))  # headroom for Mosaic scratch

    def vmem_bytes(tn):
        x_buf = 2 * tn * d * itemsize                                   # dbl-buffered x
        out_buf = 2 * tn * (n_exp * itemsize + top_k * (itemsize + 4))  # dbl-buffered outs
        w_buf = d * n_exp * itemsize                                    # resident weight
        tmp = 6 * tn * n_exp * 4                                        # in-kernel f32/i32 temps
        return x_buf + out_buf + w_buf + tmp

    # Token tile: big enough to amortize the ~0.35us per-grid-step overhead,
    # small enough that everything double-buffered fits scoped VMEM, and with
    # >= 2 grid steps (when N allows) so both v7x TensorCores get work.
    tile_n = min(tile_n, N)
    if N >= 512:
        tile_n = min(tile_n, max(256, _round_down(N // 2, 128)))
    if tile_n < N:
        tile_n = max(8, (tile_n // 8) * 8)
    while tile_n > 128 and vmem_bytes(tile_n) > budget:
        tile_n = max(128, ((tile_n // 2) // 8) * 8)

    grid = (pl.cdiv(N, tile_n),)

    kernel = functools.partial(_router_kernel, top_k=top_k)

    cost = pl.CostEstimate(
        flops=2 * N * d * n_exp,
        transcendentals=N * n_exp,
        bytes_accessed=(N * d * itemsize + d * n_exp * itemsize
                        + N * n_exp * itemsize + N * top_k * (itemsize + 4)),
    )

    vals2d, inds2d, gates2d = pl.pallas_call(
        kernel,
        out_shape=(
            jax.ShapeDtypeStruct((N, top_k), hidden_states.dtype),
            jax.ShapeDtypeStruct((N, top_k), jnp.int32),
            jax.ShapeDtypeStruct((N, n_exp), hidden_states.dtype),
        ),
        grid_spec=pltpu.PrefetchScalarGridSpec(
            num_scalar_prefetch=0,
            grid=grid,
            in_specs=[
                pl.BlockSpec((tile_n, d), lambda i: (i, 0)),    # x token tile (streamed)
                # Constant block index -> Pallas DMAs the weight once and keeps
                # it VMEM-resident across grid steps.
                pl.BlockSpec((d, n_exp), lambda i: (0, 0)),
            ],
            out_specs=[
                pl.BlockSpec((tile_n, top_k), lambda i: (i, 0)),
                pl.BlockSpec((tile_n, top_k), lambda i: (i, 0)),
                pl.BlockSpec((tile_n, n_exp), lambda i: (i, 0)),
            ],
        ),
        compiler_params=pltpu.CompilerParams(
            dimension_semantics=("parallel",),   # token tiles shard across TCs
            vmem_limit_bytes=int(vmem_limit),
        ),
        cost_estimate=cost,
    )(x2d, wg_t)

    # Outputs are already token-major: only free reshapes here, no transposes.
    return (vals2d.reshape(B, T, top_k),
            inds2d.reshape(B, T, top_k),
            gates2d.reshape(B, T, n_exp))


if __name__ == "__main__":
    # Small shapes consistent with the module: d=32 hidden, n_exp=8 experts,
    # top_k=2, batch=2, seq=8.
    B, T, d, n_exp, top_k = 2, 8, 32, 8, 2

    key = jax.random.PRNGKey(0)
    k_x, k_wg, k_wn = jax.random.split(key, 3)

    hidden_states = jax.random.normal(k_x, (B, T, d), dtype=jnp.float32)
    # nn.Linear(d, n_exp, bias=False) weight: (n_exp, d), ~U(-1/sqrt(d), 1/sqrt(d))
    bound = 1.0 / (d ** 0.5)
    gate_w = jax.random.uniform(k_wg, (n_exp, d), jnp.float32, -bound, bound)
    # noise_proj weight (n_exp, d) ~ N(0, 0.01): allocated deterministically but
    # unused in the eval-mode forward.
    noise_w = 0.01 * jax.random.normal(k_wn, (n_exp, d), dtype=jnp.float32)
    del noise_w  # eval path does not use it

    vals, inds, gates = noisy_topk_router_forward(hidden_states, gate_w, top_k)
    jax.block_until_ready((vals, inds, gates))

    # Reference check in plain JAX (tolerance loosened for the EUP approx
    # reciprocal in the softmax; index ordering is unaffected by it).
    logits_ref = hidden_states @ gate_w.T
    gates_ref = jax.nn.softmax(logits_ref, axis=-1)
    vals_ref, inds_ref = jax.lax.top_k(gates_ref, top_k)
    assert jnp.allclose(gates, gates_ref, atol=2e-3, rtol=2e-3)
    assert jnp.allclose(vals, vals_ref, atol=2e-3, rtol=2e-3)
    assert jnp.all(inds == inds_ref)

    print("KERNEL_OK")
</pallas_src>

<mosaic_0001>
module attributes {stable_mosaic.version = 11 : i64} {
  func.func @_router_kernel(%arg0: i32, %arg1: memref<16x32xf32, #tpu.memory_space<vmem>>, %arg2: memref<32x8xf32, #tpu.memory_space<vmem>>, %arg3: memref<16x2xf32, #tpu.memory_space<vmem>>, %arg4: memref<16x2xi32, #tpu.memory_space<vmem>>, %arg5: memref<16x8xf32, #tpu.memory_space<vmem>>) attributes {dimension_semantics = [#tpu.dimension_semantics<parallel>], iteration_bounds = array<i64: 1>, scalar_prefetch = 0 : i64, scratch_operands = 0 : i64, tpu.core_type = #tpu.core_type<tc>, window_params = [{transform_indices = @transform_0, window_bounds = array<i64: 16, 32>}, {pipeline_mode = #tpu.pipeline_mode<synchronous>, transform_indices = @transform_1, window_bounds = array<i64: 32, 8>}, {transform_indices = @transform_2, window_bounds = array<i64: 16, 2>}, {transform_indices = @transform_3, window_bounds = array<i64: 16, 2>}, {transform_indices = @transform_4, window_bounds = array<i64: 16, 8>}]} {
    %c0 = arith.constant 0 : index
    %c0_0 = arith.constant 0 : index
    %0 = vector.load %arg1[%c0, %c0_0] : memref<16x32xf32, #tpu.memory_space<vmem>>, vector<16x32xf32>
    %c0_1 = arith.constant 0 : index
    %c0_2 = arith.constant 0 : index
    %1 = vector.load %arg2[%c0_1, %c0_2] : memref<32x8xf32, #tpu.memory_space<vmem>>, vector<32x8xf32>
    %cst = arith.constant dense<0.000000e+00> : vector<16x8xf32>
    %2 = tpu.matmul %0, %1, %cst {dimension_numbers = #tpu.dot_dimension_numbers<[1], [0], [0], [1], [0, 0, 1, 1], [], []>} : vector<16x32xf32>, vector<32x8xf32>, vector<16x8xf32> -> vector<16x8xf32>
    %cst_3 = arith.constant dense<0xFF800000> : vector<16xf32>
    %3 = vector.multi_reduction <maximumf>, %2, %cst_3 [1] : vector<16x8xf32> to vector<16xf32>
    %4 = vector.shape_cast %3 : vector<16xf32> to vector<16x1xf32>
    %5 = vector.broadcast %4 : vector<16x1xf32> to vector<16x8xf32>
    %6 = arith.subf %2, %5 : vector<16x8xf32>
    %7 = math.exp %6 : vector<16x8xf32>
    %cst_4 = arith.constant dense<0.000000e+00> : vector<16xf32>
    %8 = vector.multi_reduction <add>, %7, %cst_4 [1] : vector<16x8xf32> to vector<16xf32>
    %9 = vector.shape_cast %8 : vector<16xf32> to vector<16x1xf32>
    %10 = tpu.reciprocal %9 {approx = true} : vector<16x1xf32> -> vector<16x1xf32>
    %11 = vector.broadcast %10 : vector<16x1xf32> to vector<16x8xf32>
    %12 = arith.mulf %7, %11 : vector<16x8xf32>
    %c0_5 = arith.constant 0 : index
    %c0_6 = arith.constant 0 : index
    %13 = vector.load %arg5[%c0_5, %c0_6] : memref<16x8xf32, #tpu.memory_space<vmem>>, vector<16x8xf32>
    tpu.vector_store %arg5[%c0_5, %c0_6], %12 {strides = array<i32>} : memref<16x8xf32, #tpu.memory_space<vmem>>, vector<16x8xf32>,
    %14 = tpu.iota {dimensions = array<i32: 1>} : vector<16x8xi32>
    %cst_7 = arith.constant dense<0xFF800000> : vector<16xf32>
    %15 = vector.multi_reduction <maximumf>, %12, %cst_7 [1] : vector<16x8xf32> to vector<16xf32>
    %16 = vector.shape_cast %15 : vector<16xf32> to vector<16x1xf32>
    %17 = vector.broadcast %16 : vector<16x1xf32> to vector<16x8xf32>
    %18 = arith.cmpf oeq, %12, %17 : vector<16x8xf32>
    %c8_i32 = arith.constant 8 : i32
    %19 = vector.broadcast %c8_i32 : i32 to vector<16x8xi32>
    %20 = arith.select %18, %14, %19 : vector<16x8xi1>, vector<16x8xi32>
    %cst_8 = arith.constant dense<2147483647> : vector<16xi32>
    %21 = vector.multi_reduction <minsi>, %20, %cst_8 [1] : vector<16x8xi32> to vector<16xi32>
    %22 = vector.shape_cast %21 : vector<16xi32> to vector<16x1xi32>
    %23 = vector.broadcast %22 : vector<16x1xi32> to vector<16x8xi32>
    %24 = arith.cmpi eq, %14, %23 : vector<16x8xi32>
    %cst_9 = arith.constant 0xFF800000 : f32
    %25 = vector.broadcast %cst_9 : f32 to vector<16x8xf32>
    %26 = arith.select %24, %25, %12 : vector<16x8xi1>, vector<16x8xf32>
    %cst_10 = arith.constant dense<0xFF800000> : vector<16xf32>
    %27 = vector.multi_reduction <maximumf>, %26, %cst_10 [1] : vector<16x8xf32> to vector<16xf32>
    %28 = vector.shape_cast %27 : vector<16xf32> to vector<16x1xf32>
    %29 = vector.broadcast %28 : vector<16x1xf32> to vector<16x8xf32>
    %30 = arith.cmpf oeq, %26, %29 : vector<16x8xf32>
    %c8_i32_11 = arith.constant 8 : i32
    %31 = vector.broadcast %c8_i32_11 : i32 to vector<16x8xi32>
    %32 = arith.select %30, %14, %31 : vector<16x8xi1>, vector<16x8xi32>
    %cst_12 = arith.constant dense<2147483647> : vector<16xi32>
    %33 = vector.multi_reduction <minsi>, %32, %cst_12 [1] : vector<16x8xi32> to vector<16xi32>
    %34 = vector.shape_cast %33 : vector<16xi32> to vector<16x1xi32>
    %35 = tpu.concatenate %16, %28 in 1 : vector<16x1xf32>, vector<16x1xf32> -> vector<16x2xf32>
    %c0_13 = arith.constant 0 : index
    %c0_14 = arith.constant 0 : index
    %36 = vector.load %arg3[%c0_13, %c0_14] : memref<16x2xf32, #tpu.memory_space<vmem>>, vector<16x2xf32>
    tpu.vector_store %arg3[%c0_13, %c0_14], %35 {strides = array<i32>} : memref<16x2xf32, #tpu.memory_space<vmem>>, vector<16x2xf32>,
    %37 = tpu.concatenate %22, %34 in 1 : vector<16x1xi32>, vector<16x1xi32> -> vector<16x2xi32>
    %c0_15 = arith.constant 0 : index
    %c0_16 = arith.constant 0 : index
    %38 = vector.load %arg4[%c0_15, %c0_16] : memref<16x2xi32, #tpu.memory_space<vmem>>, vector<16x2xi32>
    tpu.vector_store %arg4[%c0_15, %c0_16], %37 {strides = array<i32>} : memref<16x2xi32, #tpu.memory_space<vmem>>, vector<16x2xi32>,
    return
  }
  func.func @transform_0(%arg0: i32) -> (i32, i32) {
    %c0_i32 = arith.constant 0 : i32
    %c0_i32_0 = arith.constant 0 : i32
    return %arg0, %c0_i32 : i32, i32
  }
  func.func @transform_1(%arg0: i32) -> (i32, i32) {
    %c0_i32 = arith.constant 0 : i32
    %c0_i32_0 = arith.constant 0 : i32
    %c0_i32_1 = arith.constant 0 : i32
    return %c0_i32, %c0_i32_0 : i32, i32
  }
  func.func @transform_2(%arg0: i32) -> (i32, i32) {
    %c0_i32 = arith.constant 0 : i32
    %c0_i32_0 = arith.constant 0 : i32
    return %arg0, %c0_i32 : i32, i32
  }
  func.func @transform_3(%arg0: i32) -> (i32, i32) {
    %c0_i32 = arith.constant 0 : i32
    %c0_i32_0 = arith.constant 0 : i32
    return %arg0, %c0_i32 : i32, i32
  }
  func.func @transform_4(%arg0: i32) -> (i32, i32) {
    %c0_i32 = arith.constant 0 : i32
    %c0_i32_0 = arith.constant 0 : i32
    return %arg0, %c0_i32 : i32, i32
  }
}

</mosaic_0001>

<llo_original>
// kernel: tpu_custom_call.1
$region0: #{tpu_custom_call.1}
  #allocation0 [shape = 'u32[]', space=smem, size = 0x4, offset = 0x4, fixed_abs, tag = 'smem constant byte address 0x4 - core index']
  #allocation1 [shape = 'u32[72,128]{1,0:T(1,128)}', space=vmem, size = 0x9000, scoped, tag = 'internal scratch']
  %s0 = inlined_call_operand.vmem [shape: f32[16,32], index: 0, kind: input, shape index: {}]
  %s1 = inlined_call_operand.vmem [shape: f32[32,8], index: 1, kind: input, shape index: {}]
  %s2 = inlined_call_operand.vmem [shape: f32[16,2], index: 2, kind: output, shape index: {0}]
  %s3 = inlined_call_operand.vmem [shape: s32[16,2], index: 3, kind: output, shape index: {1}]
  %s4 = inlined_call_operand.vmem [shape: f32[16,8], index: 4, kind: output, shape index: {2}]
  %5 = xla_tuple %s2, %s3, %s4
  %s6 = sld [smem:[#allocation0]]
  $region34: #{tpu_custom_call.1} parent=0
    _
  %s8 = ssub.s32 1, %s6
  %s9 = scalar_select 0, %s8, %s6
  // Predicated region
  $region2: #{tpu_custom_call.1} parent=0 // pred_check
    _
  $region3: #{tpu_custom_call.1} parent=0 // pred_check_branch
    %11 = sbr.rel (0) target = $region5
  $region4: #{tpu_custom_call.1} parent=0 // pred_region
    _
  $region5: #{tpu_custom_call.1} parent=0 // pred_fallthru
    _
  // Predicated region
  $region6: #{tpu_custom_call.1} parent=0 // pred_check
    _
  $region7: #{tpu_custom_call.1} parent=0 // pred_check_branch
    %13 = sbr.rel (0) target = $region9
  $region8: #{tpu_custom_call.1} parent=0 // pred_region
    _
  $region9: #{tpu_custom_call.1} parent=0 // pred_fallthru
    _
  %v14 = vld [vmem:[%s0] sm:$0xff]
  %v15 = vld [vmem:[%s0 + $0x8] sm:$0xff]
  %v16 = vld [vmem:[%s1] sm:$0xff]
  %v17 = vld [vmem:[%s1 + $0x8] sm:$0xff]
  %v18 = vld [vmem:[%s1 + $0x10] sm:$0xff]
  %v19 = vld [vmem:[%s1 + $0x18] sm:$0xff]
  %vm20 = vcmask 261120
  %v22 = vsel %vm20, %v14, 0
  %v25 = vsel %vm20, %v15, 0
  %27 = vmatpush.msra.mxu0 0.0
  %28 = vmatpush.msra.mxu0 0.0
  %29 = vmatpush.msra.mxu0 0.0
  %30 = vmatpush.msra.mxu0 0.0
  %31 = vmatpush.msra.mxu0 0.0
  %32 = vmatpush.msra.mxu0 0.0
  %33 = vmatpush.msra.mxu0 0.0
  %34 = vmatpush.msra.mxu0 0.0
  %35 = vmatpush.msra.mxu0 0.0
  %36 = vmatpush.msra.mxu0 0.0
  %37 = vmatpush.msra.mxu0 0.0
  %38 = vmatpush.msra.mxu0 0.0
  %39 = vmatpush.msra.mxu0 %v19
  %40 = vmatpush.msra.mxu0 %v18
  %41 = vmatpush.msra.mxu0 %v17
  %42 = vmatpush.msra.mxu0 %v16
  %43 = vmatmul.f32.gmra.mxu0 %v22
  %v44 = vpop.f32.mrf.mxu0
  %v45 = vadd.f32 0.0, %v44
  %46 = vmatmul.f32.gmra.mxu0 %v25
  %v47 = vpop.f32.mrf.mxu0
  %v48 = vadd.f32 0.0, %v47
  %49 = vdwg.mxu0
  %vm50 = vcmask 64512
  %v51 = vsel %vm50, %v45, -inf
  %52 = vmax.xlane.f32.xlu0 %v51
  %v53 = vpop.xlane.xlu0 %52
  %v54 = vsel %vm50, %v48, -inf
  %55 = vmax.xlane.f32.xlu0 %v54
  %v56 = vpop.xlane.xlu0 %55
  %v57 = vsub.f32 %v45, %v53
  %v58 = vsub.f32 %v48, %v56
  %v59 = vmul.f32 %v57, 1.442695
  %v60 = vpow.pop %v59
  %v61 = vmul.f32 %v58, 1.442695
  %v62 = vpow.pop %v61
  %v63 = vsel %vm50, %v60, 0.0
  %64 = vadd.xlane.f32.xlu0 %v63
  %v65 = vpop.xlane.xlu0 %64
  %v66 = vsel %vm50, %v62, 0.0
  %67 = vadd.xlane.f32.xlu0 %v66
  %v68 = vpop.xlane.xlu0 %67
  %v69 = vrcp.pop %v65
  %v70 = vrcp.pop %v68
  %v71 = vmul.f32 %v60, %v69
  %v72 = vmul.f32 %v62, %v70
  %73 = vst.msk [vmem:[%s4] sm:$0xff] %vm50, %v71
  %74 = vst.msk [vmem:[%s4 + $0x8] sm:$0xff] %vm50, %v72
  %v75 = vlaneseq
  %v76 = vand.u32 %v75, 127
  %v77 = vsel %vm50, %v71, -inf
  %78 = vmax.xlane.f32.xlu0 %v77
  %v79 = vpop.xlane.xlu0 %78
  %v80 = vsel %vm50, %v72, -inf
  %81 = vmax.xlane.f32.xlu0 %v80
  %v82 = vpop.xlane.xlu0 %81
  %vm83 = vcmp.eq.f32.partialorder %v71, %v79
  %vm84 = vcmp.eq.f32.partialorder %v72, %v82
  %v85 = vsel %vm83, %v76, 8
  %v86 = vsel %vm84, %v76, 8
  %v87 = vsel %vm50, %v85, 2147483647
  %v88 = vand.u32 %v87, 65535
  %v89 = vshra.s32 %v87, 16
  %v90 = vcvt.s32.f32 %v88
  %v91 = vcvt.s32.f32 %v89
  %92 = vmin.xlane.f32.xlu0 %v91
  %v93 = vpop.xlane.xlu0 %92
  %vm94 = vcmp.eq.f32.partialorder %v91, %v93
  %v95 = vsel %vm94, %v90, inf
  %96 = vmin.xlane.f32.xlu0 %v95
  %v97 = vpop.xlane.xlu0 %96
  %v98 = vcvt.f32.s32 %v97
  %v99 = vcvt.f32.s32 %v93
  %v100 = vshll.u32 %v99, 16
  %v101 = vadd.s32 %v100, %v98
  %v102 = vsel %vm50, %v86, 2147483647
  %v103 = vand.u32 %v102, 65535
  %v104 = vshra.s32 %v102, 16
  %v105 = vcvt.s32.f32 %v103
  %v106 = vcvt.s32.f32 %v104
  %107 = vmin.xlane.f32.xlu0 %v106
  %v108 = vpop.xlane.xlu0 %107
  %vm109 = vcmp.eq.f32.partialorder %v106, %v108
  %v110 = vsel %vm109, %v105, inf
  %111 = vmin.xlane.f32.xlu0 %v110
  %v112 = vpop.xlane.xlu0 %111
  %v113 = vcvt.f32.s32 %v112
  %v114 = vcvt.f32.s32 %v108
  %v115 = vshll.u32 %v114, 16
  %v116 = vadd.s32 %v115, %v113
  %vm117 = vcmp.eq.s32.totalorder %v76, %v101
  %vm118 = vcmp.eq.s32.totalorder %v76, %v116
  %v119 = vsel %vm117, -inf, %v71
  %v120 = vsel %vm118, -inf, %v72
  %v121 = vsel %vm50, %v119, -inf
  %122 = vmax.xlane.f32.xlu0 %v121
  %v123 = vpop.xlane.xlu0 %122
  %v124 = vsel %vm50, %v120, -inf
  %125 = vmax.xlane.f32.xlu0 %v124
  %v126 = vpop.xlane.xlu0 %125
  %vm127 = vcmp.eq.f32.partialorder %v119, %v123
  %vm128 = vcmp.eq.f32.partialorder %v120, %v126
  %v129 = vsel %vm127, %v76, 8
  %v130 = vsel %vm128, %v76, 8
  %v131 = vsel %vm50, %v129, 2147483647
  %v132 = vand.u32 %v131, 65535
  %v133 = vshra.s32 %v131, 16
  %v134 = vcvt.s32.f32 %v132
  %v135 = vcvt.s32.f32 %v133
  %136 = vmin.xlane.f32.xlu0 %v135
  %v137 = vpop.xlane.xlu0 %136
  %vm138 = vcmp.eq.f32.partialorder %v135, %v137
  %v139 = vsel %vm138, %v134, inf
  %140 = vmin.xlane.f32.xlu0 %v139
  %v141 = vpop.xlane.xlu0 %140
  %v142 = vcvt.f32.s32 %v141
  %v143 = vcvt.f32.s32 %v137
  %v144 = vshll.u32 %v143, 16
  %v145 = vadd.s32 %v144, %v142
  %v146 = vsel %vm50, %v130, 2147483647
  %v147 = vand.u32 %v146, 65535
  %v148 = vshra.s32 %v146, 16
  %v149 = vcvt.s32.f32 %v147
  %v150 = vcvt.s32.f32 %v148
  %151 = vmin.xlane.f32.xlu0 %v150
  %v152 = vpop.xlane.xlu0 %151
  %vm153 = vcmp.eq.f32.partialorder %v150, %v152
  %v154 = vsel %vm153, %v149, inf
  %155 = vmin.xlane.f32.xlu0 %v154
  %v156 = vpop.xlane.xlu0 %155
  %v157 = vcvt.f32.s32 %v156
  %v158 = vcvt.f32.s32 %v152
  %v159 = vshll.u32 %v158, 16
  %v160 = vadd.s32 %v159, %v157
  %vm161 = vcmask 7168
  %v162 = vsel %vm161, %v79, %v123
  %v163 = vsel %vm161, %v82, %v126
  %vm164 = vcmask 15360
  %165 = vst.msk [vmem:[%s2] sm:$0xff] %vm164, %v162
  %166 = vst.msk [vmem:[%s2 + $0x8] sm:$0xff] %vm164, %v163
  %v167 = vsel %vm161, %v101, %v145
  %v168 = vsel %vm161, %v116, %v160
  %169 = vst.msk [vmem:[%s3] sm:$0xff] %vm164, %v167
  %170 = vst.msk [vmem:[%s3 + $0x8] sm:$0xff] %vm164, %v168
  // Predicated region
  $region10: #{tpu_custom_call.1} parent=0 // pred_check
    _
  $region11: #{tpu_custom_call.1} parent=0 // pred_check_branch
    %172 = sbr.rel (0) target = $region13
  $region12: #{tpu_custom_call.1} parent=0 // pred_region
    _
  $region13: #{tpu_custom_call.1} parent=0 // pred_fallthru
    _
  // Predicated region
  $region14: #{tpu_custom_call.1} parent=0 // pred_check
    _
  $region15: #{tpu_custom_call.1} parent=0 // pred_check_branch
    %174 = sbr.rel (0) target = $region17
  $region16: #{tpu_custom_call.1} parent=0 // pred_region
    _
  $region17: #{tpu_custom_call.1} parent=0 // pred_fallthru
    _
  // Predicated region
  $region18: #{tpu_custom_call.1} parent=0 // pred_check
    _
  $region19: #{tpu_custom_call.1} parent=0 // pred_check_branch
    %176 = sbr.rel (0) target = $region21
  $region20: #{tpu_custom_call.1} parent=0 // pred_region
    _
  $region21: #{tpu_custom_call.1} parent=0 // pred_fallthru
    _
  // Predicated region
  $region22: #{tpu_custom_call.1} parent=0 // pred_check
    _
  $region23: #{tpu_custom_call.1} parent=0 // pred_check_branch
    %178 = sbr.rel (0) target = $region25
  $region24: #{tpu_custom_call.1} parent=0 // pred_region
    _
  $region25: #{tpu_custom_call.1} parent=0 // pred_fallthru
    _
  // Predicated region
  $region26: #{tpu_custom_call.1} parent=0 // pred_check
    _
  $region27: #{tpu_custom_call.1} parent=0 // pred_check_branch
    %180 = sbr.rel (0) target = $region29
  $region28: #{tpu_custom_call.1} parent=0 // pred_region
    _
  $region29: #{tpu_custom_call.1} parent=0 // pred_fallthru
    _
  // Predicated region
  $region30: #{tpu_custom_call.1} parent=0 // pred_check
    _
  $region31: #{tpu_custom_call.1} parent=0 // pred_check_branch
    %182 = sbr.rel (0) target = $region33
  $region32: #{tpu_custom_call.1} parent=0 // pred_region
    _
  $region33: #{tpu_custom_call.1} parent=0 // pred_fallthru
    _

</llo_original>
